<compile_context>
chip_gen: v6e
topology: v6e:2x2x1
jax: 0.10.0
libtpu: 0.0.40
codegen_flags: <defaults>
</compile_context>

<pallas_src>
import jax
import jax.numpy as jnp
from jax.experimental import pallas as pl
from jax.experimental.pallas import tpu as pltpu

NUM_HIDDEN = 10
NUM_LAYERS = NUM_HIDDEN + 1  # 10 hidden + 1 output
LANE = 128
SUBLANE = 8


def _round_up(x, m):
    return (x + m - 1) // m * m


def _ffnet_kernel(x_ref, w_ref, b_ref, o_ref):
    """x_ref: (TB, D) f32, w_ref: (11, D, D) f32, b_ref: (11, 1, D) f32,
    o_ref: (TB, 1) f32.  Whole 11-layer chain fused; weights stay VMEM-resident
    across grid steps (constant index_map)."""
    h = x_ref[...]  # (TB, D) f32
    # 10 hidden layers: MXU matmul + bias + ReLU.  The (1,D)->(TB,D) bias
    # broadcast per layer is minor (VPU has slack at these sizes).
    for i in range(NUM_HIDDEN):
        h = jnp.dot(h, w_ref[i], preferred_element_type=jnp.float32)
        h = jnp.maximum(h + b_ref[i], 0.0)
    # Output layer (weight zero-padded to 128 lanes -> unmasked matmul); only
    # column 0 is the real logit.
    y = jnp.dot(h, w_ref[NUM_LAYERS - 1], preferred_element_type=jnp.float32)
    y = y + b_ref[NUM_LAYERS - 1]
    o_ref[...] = jax.nn.sigmoid(y[:, :1]).astype(o_ref.dtype)


def pack_params(weights, biases):
    """Pack per-layer params into padded slabs.

    weights[i]: (in_i, out_i)  (already transposed vs. PyTorch nn.Linear)
    biases[i] : (1, out_i) or (out_i,)

    Returns W (n, D, D) and B (n, 1, D) f32, zero-padded so padded lanes
    propagate exact zeros through every ReLU layer.  One-time host-side cost.
    """
    n = len(weights)
    max_dim = max(max(w.shape) for w in weights)
    D = max(LANE, _round_up(max_dim, LANE))
    w_slab = jnp.zeros((n, D, D), jnp.float32)
    b_slab = jnp.zeros((n, 1, D), jnp.float32)
    for i, (w, b) in enumerate(zip(weights, biases)):
        di, do = w.shape
        w_slab = w_slab.at[i, :di, :do].set(w.astype(jnp.float32))
        b_slab = b_slab.at[i, 0, :do].set(jnp.reshape(b, (-1,)).astype(jnp.float32))
    return w_slab, b_slab


@jax.jit
def ffnet10hidden_forward(x, w_slab, b_slab):
    """x: (B, input_size) f32; w_slab: (11, D, D); b_slab: (11, 1, D) -> (B, 1)."""
    B, d_in = x.shape
    n_layers, D, _ = w_slab.shape

    # Batch tile: >= 8 sublanes, capped at 256 rows (plenty to amortize the 11
    # serialized MXU pushes while keeping double-buffered blocks tiny on v7x's
    # 64 MiB VMEM).
    TB = min(256, _round_up(max(B, 1), SUBLANE))
    B_pad = _round_up(B, TB)

    # Zero-pad batch to a TB multiple and features to the padded lane width.
    x_p = jnp.pad(x.astype(jnp.float32), ((0, B_pad - B), (0, D - d_in)))

    grid = (B_pad // TB,)

    cost = pl.CostEstimate(
        flops=2 * B_pad * D * D * n_layers,
        transcendentals=B_pad,  # sigmoid
        bytes_accessed=4 * (x_p.size + w_slab.size + b_slab.size + B_pad),
    )

    out = pl.pallas_call(
        _ffnet_kernel,
        out_shape=jax.ShapeDtypeStruct((B_pad, 1), jnp.float32),
        grid=grid,
        in_specs=[
            pl.BlockSpec((TB, D), lambda i: (i, 0)),                 # x: tiled over batch
            pl.BlockSpec((n_layers, D, D), lambda i: (0, 0, 0)),     # weights: VMEM-resident
            pl.BlockSpec((n_layers, 1, D), lambda i: (0, 0, 0)),     # biases: VMEM-resident
        ],
        out_specs=pl.BlockSpec((TB, 1), lambda i: (i, 0)),
        compiler_params=pltpu.CompilerParams(
            dimension_semantics=("parallel",),       # megacore split on v7x
            vmem_limit_bytes=32 * 1024 * 1024,
        ),
        cost_estimate=cost,
    )(x_p, w_slab, b_slab)

    return out[:B]


def _reference_forward(x, weights, biases):
    h = x
    for i in range(NUM_HIDDEN):
        h = jnp.maximum(h @ weights[i] + biases[i], 0.0)
    return jax.nn.sigmoid(h @ weights[NUM_LAYERS - 1] + biases[NUM_LAYERS - 1])


if __name__ == "__main__":
    key = jax.random.PRNGKey(0)

    # Shapes consistent with the module: input_size=32, ten hidden layers of
    # size 32, final output size 1. Batch = 8.
    batch = 8
    input_size = 32
    hidden_layers_sizes = [32] * 10
    layer_dims = [input_size] + hidden_layers_sizes + [1]

    keys = jax.random.split(key, NUM_LAYERS + 1)
    weights, biases = [], []
    for i in range(NUM_LAYERS):
        kw, kb = jax.random.split(keys[i])
        bound = 1.0 / jnp.sqrt(float(layer_dims[i]))
        w = jax.random.uniform(kw, (layer_dims[i], layer_dims[i + 1]),
                               jnp.float32, -bound, bound)
        b = jax.random.uniform(kb, (1, layer_dims[i + 1]),
                               jnp.float32, -bound, bound)
        weights.append(w)
        biases.append(b)

    x = jax.random.normal(keys[-1], (batch, input_size), jnp.float32)

    w_slab, b_slab = pack_params(weights, biases)

    out = jax.block_until_ready(ffnet10hidden_forward(x, w_slab, b_slab))

    ref = _reference_forward(x, weights, biases)
    assert out.shape == (batch, 1), out.shape
    assert jnp.allclose(out, ref, atol=1e-5, rtol=1e-5), (
        f"max abs diff {jnp.max(jnp.abs(out - ref))}")

    print("KERNEL_OK")
</pallas_src>

<mosaic_0001>
module attributes {stable_mosaic.version = 11 : i64} {
  func.func @_ffnet_kernel(%arg0: i32, %arg1: memref<8x128xf32, #tpu.memory_space<vmem>>, %arg2: memref<11x128x128xf32, #tpu.memory_space<vmem>>, %arg3: memref<11x1x128xf32, #tpu.memory_space<vmem>>, %arg4: memref<8x1xf32, #tpu.memory_space<vmem>>) attributes {dimension_semantics = [#tpu.dimension_semantics<parallel>], iteration_bounds = array<i64: 1>, scalar_prefetch = 0 : i64, scratch_operands = 0 : i64, tpu.core_type = #tpu.core_type<tc>, window_params = [{transform_indices = @transform_0, window_bounds = array<i64: 8, 128>}, {pipeline_mode = #tpu.pipeline_mode<synchronous>, transform_indices = @transform_1, window_bounds = array<i64: 11, 128, 128>}, {pipeline_mode = #tpu.pipeline_mode<synchronous>, transform_indices = @transform_2, window_bounds = array<i64: 11, 1, 128>}, {transform_indices = @transform_3, window_bounds = array<i64: 8, 1>}]} {
    %c0 = arith.constant 0 : index
    %c0_0 = arith.constant 0 : index
    %0 = vector.load %arg1[%c0, %c0_0] : memref<8x128xf32, #tpu.memory_space<vmem>>, vector<8x128xf32>
    %c0_1 = arith.constant 0 : index
    %c0_2 = arith.constant 0 : index
    %c0_3 = arith.constant 0 : index
    %1 = vector.load %arg2[%c0_1, %c0_2, %c0_3] : memref<11x128x128xf32, #tpu.memory_space<vmem>>, vector<1x128x128xf32>
    %2 = vector.shape_cast %1 : vector<1x128x128xf32> to vector<128x128xf32>
    %cst = arith.constant dense<0.000000e+00> : vector<8x128xf32>
    %3 = tpu.matmul %0, %2, %cst {dimension_numbers = #tpu.dot_dimension_numbers<[1], [0], [0], [1], [0, 0, 1, 1], [], []>} : vector<8x128xf32>, vector<128x128xf32>, vector<8x128xf32> -> vector<8x128xf32>
    %c0_4 = arith.constant 0 : index
    %c0_5 = arith.constant 0 : index
    %c0_6 = arith.constant 0 : index
    %4 = vector.load %arg3[%c0_4, %c0_5, %c0_6] : memref<11x1x128xf32, #tpu.memory_space<vmem>>, vector<1x1x128xf32>
    %5 = vector.shape_cast %4 : vector<1x1x128xf32> to vector<1x128xf32>
    %6 = vector.broadcast %5 : vector<1x128xf32> to vector<8x128xf32>
    %7 = arith.addf %3, %6 : vector<8x128xf32>
    %cst_7 = arith.constant 0.000000e+00 : f32
    %8 = vector.broadcast %cst_7 : f32 to vector<8x128xf32>
    %9 = arith.maximumf %7, %8 : vector<8x128xf32>
    %c1 = arith.constant 1 : index
    %c0_8 = arith.constant 0 : index
    %c0_9 = arith.constant 0 : index
    %10 = vector.load %arg2[%c1, %c0_8, %c0_9] : memref<11x128x128xf32, #tpu.memory_space<vmem>>, vector<1x128x128xf32>
    %11 = vector.shape_cast %10 : vector<1x128x128xf32> to vector<128x128xf32>
    %cst_10 = arith.constant dense<0.000000e+00> : vector<8x128xf32>
    %12 = tpu.matmul %9, %11, %cst_10 {dimension_numbers = #tpu.dot_dimension_numbers<[1], [0], [0], [1], [0, 0, 1, 1], [], []>} : vector<8x128xf32>, vector<128x128xf32>, vector<8x128xf32> -> vector<8x128xf32>
    %c1_11 = arith.constant 1 : index
    %c0_12 = arith.constant 0 : index
    %c0_13 = arith.constant 0 : index
    %13 = vector.load %arg3[%c1_11, %c0_12, %c0_13] : memref<11x1x128xf32, #tpu.memory_space<vmem>>, vector<1x1x128xf32>
    %14 = vector.shape_cast %13 : vector<1x1x128xf32> to vector<1x128xf32>
    %15 = vector.broadcast %14 : vector<1x128xf32> to vector<8x128xf32>
    %16 = arith.addf %12, %15 : vector<8x128xf32>
    %cst_14 = arith.constant 0.000000e+00 : f32
    %17 = vector.broadcast %cst_14 : f32 to vector<8x128xf32>
    %18 = arith.maximumf %16, %17 : vector<8x128xf32>
    %c2 = arith.constant 2 : index
    %c0_15 = arith.constant 0 : index
    %c0_16 = arith.constant 0 : index
    %19 = vector.load %arg2[%c2, %c0_15, %c0_16] : memref<11x128x128xf32, #tpu.memory_space<vmem>>, vector<1x128x128xf32>
    %20 = vector.shape_cast %19 : vector<1x128x128xf32> to vector<128x128xf32>
    %cst_17 = arith.constant dense<0.000000e+00> : vector<8x128xf32>
    %21 = tpu.matmul %18, %20, %cst_17 {dimension_numbers = #tpu.dot_dimension_numbers<[1], [0], [0], [1], [0, 0, 1, 1], [], []>} : vector<8x128xf32>, vector<128x128xf32>, vector<8x128xf32> -> vector<8x128xf32>
    %c2_18 = arith.constant 2 : index
    %c0_19 = arith.constant 0 : index
    %c0_20 = arith.constant 0 : index
    %22 = vector.load %arg3[%c2_18, %c0_19, %c0_20] : memref<11x1x128xf32, #tpu.memory_space<vmem>>, vector<1x1x128xf32>
    %23 = vector.shape_cast %22 : vector<1x1x128xf32> to vector<1x128xf32>
    %24 = vector.broadcast %23 : vector<1x128xf32> to vector<8x128xf32>
    %25 = arith.addf %21, %24 : vector<8x128xf32>
    %cst_21 = arith.constant 0.000000e+00 : f32
    %26 = vector.broadcast %cst_21 : f32 to vector<8x128xf32>
    %27 = arith.maximumf %25, %26 : vector<8x128xf32>
    %c3 = arith.constant 3 : index
    %c0_22 = arith.constant 0 : index
    %c0_23 = arith.constant 0 : index
    %28 = vector.load %arg2[%c3, %c0_22, %c0_23] : memref<11x128x128xf32, #tpu.memory_space<vmem>>, vector<1x128x128xf32>
    %29 = vector.shape_cast %28 : vector<1x128x128xf32> to vector<128x128xf32>
    %cst_24 = arith.constant dense<0.000000e+00> : vector<8x128xf32>
    %30 = tpu.matmul %27, %29, %cst_24 {dimension_numbers = #tpu.dot_dimension_numbers<[1], [0], [0], [1], [0, 0, 1, 1], [], []>} : vector<8x128xf32>, vector<128x128xf32>, vector<8x128xf32> -> vector<8x128xf32>
    %c3_25 = arith.constant 3 : index
    %c0_26 = arith.constant 0 : index
    %c0_27 = arith.constant 0 : index
    %31 = vector.load %arg3[%c3_25, %c0_26, %c0_27] : memref<11x1x128xf32, #tpu.memory_space<vmem>>, vector<1x1x128xf32>
    %32 = vector.shape_cast %31 : vector<1x1x128xf32> to vector<1x128xf32>
    %33 = vector.broadcast %32 : vector<1x128xf32> to vector<8x128xf32>
    %34 = arith.addf %30, %33 : vector<8x128xf32>
    %cst_28 = arith.constant 0.000000e+00 : f32
    %35 = vector.broadcast %cst_28 : f32 to vector<8x128xf32>
    %36 = arith.maximumf %34, %35 : vector<8x128xf32>
    %c4 = arith.constant 4 : index
    %c0_29 = arith.constant 0 : index
    %c0_30 = arith.constant 0 : index
    %37 = vector.load %arg2[%c4, %c0_29, %c0_30] : memref<11x128x128xf32, #tpu.memory_space<vmem>>, vector<1x128x128xf32>
    %38 = vector.shape_cast %37 : vector<1x128x128xf32> to vector<128x128xf32>
    %cst_31 = arith.constant dense<0.000000e+00> : vector<8x128xf32>
    %39 = tpu.matmul %36, %38, %cst_31 {dimension_numbers = #tpu.dot_dimension_numbers<[1], [0], [0], [1], [0, 0, 1, 1], [], []>} : vector<8x128xf32>, vector<128x128xf32>, vector<8x128xf32> -> vector<8x128xf32>
    %c4_32 = arith.constant 4 : index
    %c0_33 = arith.constant 0 : index
    %c0_34 = arith.constant 0 : index
    %40 = vector.load %arg3[%c4_32, %c0_33, %c0_34] : memref<11x1x128xf32, #tpu.memory_space<vmem>>, vector<1x1x128xf32>
    %41 = vector.shape_cast %40 : vector<1x1x128xf32> to vector<1x128xf32>
    %42 = vector.broadcast %41 : vector<1x128xf32> to vector<8x128xf32>
    %43 = arith.addf %39, %42 : vector<8x128xf32>
    %cst_35 = arith.constant 0.000000e+00 : f32
    %44 = vector.broadcast %cst_35 : f32 to vector<8x128xf32>
    %45 = arith.maximumf %43, %44 : vector<8x128xf32>
    %c5 = arith.constant 5 : index
    %c0_36 = arith.constant 0 : index
    %c0_37 = arith.constant 0 : index
    %46 = vector.load %arg2[%c5, %c0_36, %c0_37] : memref<11x128x128xf32, #tpu.memory_space<vmem>>, vector<1x128x128xf32>
    %47 = vector.shape_cast %46 : vector<1x128x128xf32> to vector<128x128xf32>
    %cst_38 = arith.constant dense<0.000000e+00> : vector<8x128xf32>
    %48 = tpu.matmul %45, %47, %cst_38 {dimension_numbers = #tpu.dot_dimension_numbers<[1], [0], [0], [1], [0, 0, 1, 1], [], []>} : vector<8x128xf32>, vector<128x128xf32>, vector<8x128xf32> -> vector<8x128xf32>
    %c5_39 = arith.constant 5 : index
    %c0_40 = arith.constant 0 : index
    %c0_41 = arith.constant 0 : index
    %49 = vector.load %arg3[%c5_39, %c0_40, %c0_41] : memref<11x1x128xf32, #tpu.memory_space<vmem>>, vector<1x1x128xf32>
    %50 = vector.shape_cast %49 : vector<1x1x128xf32> to vector<1x128xf32>
    %51 = vector.broadcast %50 : vector<1x128xf32> to vector<8x128xf32>
    %52 = arith.addf %48, %51 : vector<8x128xf32>
    %cst_42 = arith.constant 0.000000e+00 : f32
    %53 = vector.broadcast %cst_42 : f32 to vector<8x128xf32>
    %54 = arith.maximumf %52, %53 : vector<8x128xf32>
    %c6 = arith.constant 6 : index
    %c0_43 = arith.constant 0 : index
    %c0_44 = arith.constant 0 : index
    %55 = vector.load %arg2[%c6, %c0_43, %c0_44] : memref<11x128x128xf32, #tpu.memory_space<vmem>>, vector<1x128x128xf32>
    %56 = vector.shape_cast %55 : vector<1x128x128xf32> to vector<128x128xf32>
    %cst_45 = arith.constant dense<0.000000e+00> : vector<8x128xf32>
    %57 = tpu.matmul %54, %56, %cst_45 {dimension_numbers = #tpu.dot_dimension_numbers<[1], [0], [0], [1], [0, 0, 1, 1], [], []>} : vector<8x128xf32>, vector<128x128xf32>, vector<8x128xf32> -> vector<8x128xf32>
    %c6_46 = arith.constant 6 : index
    %c0_47 = arith.constant 0 : index
    %c0_48 = arith.constant 0 : index
    %58 = vector.load %arg3[%c6_46, %c0_47, %c0_48] : memref<11x1x128xf32, #tpu.memory_space<vmem>>, vector<1x1x128xf32>
    %59 = vector.shape_cast %58 : vector<1x1x128xf32> to vector<1x128xf32>
    %60 = vector.broadcast %59 : vector<1x128xf32> to vector<8x128xf32>
    %61 = arith.addf %57, %60 : vector<8x128xf32>
    %cst_49 = arith.constant 0.000000e+00 : f32
    %62 = vector.broadcast %cst_49 : f32 to vector<8x128xf32>
    %63 = arith.maximumf %61, %62 : vector<8x128xf32>
    %c7 = arith.constant 7 : index
    %c0_50 = arith.constant 0 : index
    %c0_51 = arith.constant 0 : index
    %64 = vector.load %arg2[%c7, %c0_50, %c0_51] : memref<11x128x128xf32, #tpu.memory_space<vmem>>, vector<1x128x128xf32>
    %65 = vector.shape_cast %64 : vector<1x128x128xf32> to vector<128x128xf32>
    %cst_52 = arith.constant dense<0.000000e+00> : vector<8x128xf32>
    %66 = tpu.matmul %63, %65, %cst_52 {dimension_numbers = #tpu.dot_dimension_numbers<[1], [0], [0], [1], [0, 0, 1, 1], [], []>} : vector<8x128xf32>, vector<128x128xf32>, vector<8x128xf32> -> vector<8x128xf32>
    %c7_53 = arith.constant 7 : index
    %c0_54 = arith.constant 0 : index
    %c0_55 = arith.constant 0 : index
    %67 = vector.load %arg3[%c7_53, %c0_54, %c0_55] : memref<11x1x128xf32, #tpu.memory_space<vmem>>, vector<1x1x128xf32>
    %68 = vector.shape_cast %67 : vector<1x1x128xf32> to vector<1x128xf32>
    %69 = vector.broadcast %68 : vector<1x128xf32> to vector<8x128xf32>
    %70 = arith.addf %66, %69 : vector<8x128xf32>
    %cst_56 = arith.constant 0.000000e+00 : f32
    %71 = vector.broadcast %cst_56 : f32 to vector<8x128xf32>
    %72 = arith.maximumf %70, %71 : vector<8x128xf32>
    %c8 = arith.constant 8 : index
    %c0_57 = arith.constant 0 : index
    %c0_58 = arith.constant 0 : index
    %73 = vector.load %arg2[%c8, %c0_57, %c0_58] : memref<11x128x128xf32, #tpu.memory_space<vmem>>, vector<1x128x128xf32>
    %74 = vector.shape_cast %73 : vector<1x128x128xf32> to vector<128x128xf32>
    %cst_59 = arith.constant dense<0.000000e+00> : vector<8x128xf32>
    %75 = tpu.matmul %72, %74, %cst_59 {dimension_numbers = #tpu.dot_dimension_numbers<[1], [0], [0], [1], [0, 0, 1, 1], [], []>} : vector<8x128xf32>, vector<128x128xf32>, vector<8x128xf32> -> vector<8x128xf32>
    %c8_60 = arith.constant 8 : index
    %c0_61 = arith.constant 0 : index
    %c0_62 = arith.constant 0 : index
    %76 = vector.load %arg3[%c8_60, %c0_61, %c0_62] : memref<11x1x128xf32, #tpu.memory_space<vmem>>, vector<1x1x128xf32>
    %77 = vector.shape_cast %76 : vector<1x1x128xf32> to vector<1x128xf32>
    %78 = vector.broadcast %77 : vector<1x128xf32> to vector<8x128xf32>
    %79 = arith.addf %75, %78 : vector<8x128xf32>
    %cst_63 = arith.constant 0.000000e+00 : f32
    %80 = vector.broadcast %cst_63 : f32 to vector<8x128xf32>
    %81 = arith.maximumf %79, %80 : vector<8x128xf32>
    %c9 = arith.constant 9 : index
    %c0_64 = arith.constant 0 : index
    %c0_65 = arith.constant 0 : index
    %82 = vector.load %arg2[%c9, %c0_64, %c0_65] : memref<11x128x128xf32, #tpu.memory_space<vmem>>, vector<1x128x128xf32>
    %83 = vector.shape_cast %82 : vector<1x128x128xf32> to vector<128x128xf32>
    %cst_66 = arith.constant dense<0.000000e+00> : vector<8x128xf32>
    %84 = tpu.matmul %81, %83, %cst_66 {dimension_numbers = #tpu.dot_dimension_numbers<[1], [0], [0], [1], [0, 0, 1, 1], [], []>} : vector<8x128xf32>, vector<128x128xf32>, vector<8x128xf32> -> vector<8x128xf32>
    %c9_67 = arith.constant 9 : index
    %c0_68 = arith.constant 0 : index
    %c0_69 = arith.constant 0 : index
    %85 = vector.load %arg3[%c9_67, %c0_68, %c0_69] : memref<11x1x128xf32, #tpu.memory_space<vmem>>, vector<1x1x128xf32>
    %86 = vector.shape_cast %85 : vector<1x1x128xf32> to vector<1x128xf32>
    %87 = vector.broadcast %86 : vector<1x128xf32> to vector<8x128xf32>
    %88 = arith.addf %84, %87 : vector<8x128xf32>
    %cst_70 = arith.constant 0.000000e+00 : f32
    %89 = vector.broadcast %cst_70 : f32 to vector<8x128xf32>
    %90 = arith.maximumf %88, %89 : vector<8x128xf32>
    %c10 = arith.constant 10 : index
    %c0_71 = arith.constant 0 : index
    %c0_72 = arith.constant 0 : index
    %91 = vector.load %arg2[%c10, %c0_71, %c0_72] : memref<11x128x128xf32, #tpu.memory_space<vmem>>, vector<1x128x128xf32>
    %92 = vector.shape_cast %91 : vector<1x128x128xf32> to vector<128x128xf32>
    %cst_73 = arith.constant dense<0.000000e+00> : vector<8x128xf32>
    %93 = tpu.matmul %90, %92, %cst_73 {dimension_numbers = #tpu.dot_dimension_numbers<[1], [0], [0], [1], [0, 0, 1, 1], [], []>} : vector<8x128xf32>, vector<128x128xf32>, vector<8x128xf32> -> vector<8x128xf32>
    %c10_74 = arith.constant 10 : index
    %c0_75 = arith.constant 0 : index
    %c0_76 = arith.constant 0 : index
    %94 = vector.load %arg3[%c10_74, %c0_75, %c0_76] : memref<11x1x128xf32, #tpu.memory_space<vmem>>, vector<1x1x128xf32>
    %95 = vector.shape_cast %94 : vector<1x1x128xf32> to vector<1x128xf32>
    %96 = vector.broadcast %95 : vector<1x128xf32> to vector<8x128xf32>
    %97 = arith.addf %93, %96 : vector<8x128xf32>
    %98 = vector.extract_strided_slice %97 {offsets = [0, 0], sizes = [8, 1], strides = [1, 1]} : vector<8x128xf32> to vector<8x1xf32>
    %99 = arith.negf %98 : vector<8x1xf32>
    %100 = math.exp %99 : vector<8x1xf32>
    %cst_77 = arith.constant 1.000000e+00 : f32
    %101 = vector.broadcast %cst_77 : f32 to vector<8x1xf32>
    %102 = arith.addf %101, %100 : vector<8x1xf32>
    %103 = arith.divf %101, %102 : vector<8x1xf32>
    %c0_78 = arith.constant 0 : index
    %c0_79 = arith.constant 0 : index
    %104 = vector.load %arg4[%c0_78, %c0_79] : memref<8x1xf32, #tpu.memory_space<vmem>>, vector<8x1xf32>
    tpu.vector_store %arg4[%c0_78, %c0_79], %103 {strides = array<i32>} : memref<8x1xf32, #tpu.memory_space<vmem>>, vector<8x1xf32>,
    return
  }
  func.func @transform_0(%arg0: i32) -> (i32, i32) {
    %c0_i32 = arith.constant 0 : i32
    %c0_i32_0 = arith.constant 0 : i32
    return %arg0, %c0_i32 : i32, i32
  }
  func.func @transform_1(%arg0: i32) -> (i32, i32, i32) {
    %c0_i32 = arith.constant 0 : i32
    %c0_i32_0 = arith.constant 0 : i32
    %c0_i32_1 = arith.constant 0 : i32
    %c0_i32_2 = arith.constant 0 : i32
    return %c0_i32, %c0_i32_0, %c0_i32_1 : i32, i32, i32
  }
  func.func @transform_2(%arg0: i32) -> (i32, i32, i32) {
    %c0_i32 = arith.constant 0 : i32
    %c0_i32_0 = arith.constant 0 : i32
    %c0_i32_1 = arith.constant 0 : i32
    %c0_i32_2 = arith.constant 0 : i32
    return %c0_i32, %c0_i32_0, %c0_i32_1 : i32, i32, i32
  }
  func.func @transform_3(%arg0: i32) -> (i32, i32) {
    %c0_i32 = arith.constant 0 : i32
    %c0_i32_0 = arith.constant 0 : i32
    return %arg0, %c0_i32 : i32, i32
  }
}

</mosaic_0001>

<llo_original>
// kernel: ffnet10hidden_forward.1
$region0: #{ffnet10hidden_forward.1}
  #allocation0 [shape = 'u32[]', space=smem, size = 0x4, offset = 0x4, fixed_abs, tag = 'smem constant byte address 0x4 - core index']
  #allocation1 [shape = 'u32[144,128]{1,0:T(1,128)}', space=vmem, size = 0x12000, scoped, tag = 'internal scratch']
  %s0 = inlined_call_operand.vmem [shape: f32[8,128], index: 0, kind: input, shape index: {}]
  %s1 = inlined_call_operand.hbm [shape: f32[11,128,128], index: 1, kind: input, shape index: {}]
  %s2 = inlined_call_operand.vmem [shape: f32[11,1,128], index: 2, kind: input, shape index: {}]
  %s3 = inlined_call_operand.vmem [shape: f32[8,1], index: 3, kind: output, shape index: {}]
  %s4 = sld [smem:[#allocation0]]
  $region26: #{ffnet10hidden_forward.1} parent=0
    _
  %s6 = ssub.s32 1, %s4
  %s7 = scalar_select 0, %s6, %s4
  $region1: #{ffnet10hidden_forward.1} parent=0
    #allocation2 [shape = 'u8[720896]{0}', space=vmem, size = 0xb0000, scoped, tag = 'input window, operand 1, single buffered']
    #allocation3 [shape = 's32[1]{0}', space=sflag, size = 0x4, scoped, tag = 'scoped memory for ffnet10hidden_forward.1']
    %8 = vsyncpa [#allocation3], 0
    // Predicated region
    $region2: #{ffnet10hidden_forward.1} parent=1 // pred_check
      _
    $region3: #{ffnet10hidden_forward.1} parent=1 // pred_check_branch
      %10 = sbr.rel (0) target = $region5
    $region4: #{ffnet10hidden_forward.1} parent=1 // pred_region
      _
    $region5: #{ffnet10hidden_forward.1} parent=1 // pred_fallthru
      _
    // Predicated region
    $region6: #{ffnet10hidden_forward.1} parent=1 // pred_check
      _
    $region7: #{ffnet10hidden_forward.1} parent=1 // pred_check_branch
      %12 = sbr.rel (0) target = $region9
    $region8: #{ffnet10hidden_forward.1} parent=1 // pred_region
      %s14 = ssub.s32 22528, 22528
      %15 = vsyncadd [#allocation3], %s14
      %s16 = sshll.u32 [#allocation2], 4
      %s17 = int_to_ptr.vmem [resolvable:$true] %s16
      %22 = dma.hbm_to_vmem [thread:$0]  %s1, 22528, %s17, [#allocation3], 128, 128, 8
    $region9: #{ffnet10hidden_forward.1} parent=1 // pred_fallthru
      _
    // Predicated region
    $region10: #{ffnet10hidden_forward.1} parent=1 // pred_check
      _
    $region11: #{ffnet10hidden_forward.1} parent=1 // pred_check_branch
      %24 = sbr.rel (0) target = $region13
    $region12: #{ffnet10hidden_forward.1} parent=1 // pred_region
      _
    $region13: #{ffnet10hidden_forward.1} parent=1 // pred_fallthru
      _
    // Predicated region
    $region14: #{ffnet10hidden_forward.1} parent=1 // pred_check
      _
    $region15: #{ffnet10hidden_forward.1} parent=1 // pred_check_branch
      %26 = sbr.rel (0) target = $region17
    $region16: #{ffnet10hidden_forward.1} parent=1 // pred_region
      %27 = dma.done [#allocation3], 22528
    $region17: #{ffnet10hidden_forward.1} parent=1 // pred_fallthru
      _
    %v28 = vld [vmem:[%s0] sm:$0xff]
    %v29 = vld [vmem:[#allocation2] sm:$0xff]
    %v30 = vld [vmem:[#allocation2 + $0x8] sm:$0xff]
    %v31 = vld [vmem:[#allocation2 + $0x10] sm:$0xff]
    %v32 = vld [vmem:[#allocation2 + $0x18] sm:$0xff]
    %v33 = vld [vmem:[#allocation2 + $0x20] sm:$0xff]
    %v34 = vld [vmem:[#allocation2 + $0x28] sm:$0xff]
    %v35 = vld [vmem:[#allocation2 + $0x30] sm:$0xff]
    %v36 = vld [vmem:[#allocation2 + $0x38] sm:$0xff]
    %v37 = vld [vmem:[#allocation2 + $0x40] sm:$0xff]
    %v38 = vld [vmem:[#allocation2 + $0x48] sm:$0xff]
    %v39 = vld [vmem:[#allocation2 + $0x50] sm:$0xff]
    %v40 = vld [vmem:[#allocation2 + $0x58] sm:$0xff]
    %v41 = vld [vmem:[#allocation2 + $0x60] sm:$0xff]
    %v42 = vld [vmem:[#allocation2 + $0x68] sm:$0xff]
    %v43 = vld [vmem:[#allocation2 + $0x70] sm:$0xff]
    %v44 = vld [vmem:[#allocation2 + $0x78] sm:$0xff]
    %v45 = vld [vmem:[%s2] sm:$0x1]
    %v47 = vlaneseq
    %v48 = vshrl.u32 %v47, 7
    %v49 = vsub.s32 0, %v48
    %v50 = vrot.slane %v45, %v49
    %52 = vmatprep.subr.mxu0 0.0
    %53 = vmatpush1.msra.mxu0 %v44
    %54 = vmatprep.subr.mxu0 0.0
    %55 = vmatpush1.msra.mxu0 %v43
    %56 = vmatprep.subr.mxu0 0.0
    %57 = vmatpush1.msra.mxu0 %v42
    %58 = vmatprep.subr.mxu0 0.0
    %59 = vmatpush1.msra.mxu0 %v41
    %60 = vmatprep.subr.mxu0 0.0
    %61 = vmatpush1.msra.mxu0 %v40
    %62 = vmatprep.subr.mxu0 0.0
    %63 = vmatpush1.msra.mxu0 %v39
    %64 = vmatprep.subr.mxu0 0.0
    %65 = vmatpush1.msra.mxu0 %v38
    %66 = vmatprep.subr.mxu0 0.0
    %67 = vmatpush1.msra.mxu0 %v37
    %68 = vmatprep.subr.mxu0 0.0
    %69 = vmatpush1.msra.mxu0 %v36
    %70 = vmatprep.subr.mxu0 0.0
    %71 = vmatpush1.msra.mxu0 %v35
    %72 = vmatprep.subr.mxu0 0.0
    %73 = vmatpush1.msra.mxu0 %v34
    %74 = vmatprep.subr.mxu0 0.0
    %75 = vmatpush1.msra.mxu0 %v33
    %76 = vmatprep.subr.mxu0 0.0
    %77 = vmatpush1.msra.mxu0 %v32
    %78 = vmatprep.subr.mxu0 0.0
    %79 = vmatpush1.msra.mxu0 %v31
    %80 = vmatprep.subr.mxu0 0.0
    %81 = vmatpush1.msra.mxu0 %v30
    %82 = vmatprep.subr.mxu0 0.0
    %83 = vmatpush1.msra.mxu0 %v29
    %84 = vmatprep.subr.mxu0 0.0
    %85 = vmatpush2.msra.mxu0 0.0
    %86 = vmatprep.subr.mxu0 0.0
    %87 = vmatpush2.msra.mxu0 0.0
    %88 = vmatprep.subr.mxu0 0.0
    %89 = vmatpush2.msra.mxu0 0.0
    %90 = vmatprep.subr.mxu0 0.0
    %91 = vmatpush2.msra.mxu0 0.0
    %92 = vmatprep.subr.mxu0 0.0
    %93 = vmatpush2.msra.mxu0 0.0
    %94 = vmatprep.subr.mxu0 0.0
    %95 = vmatpush2.msra.mxu0 0.0
    %96 = vmatprep.subr.mxu0 0.0
    %97 = vmatpush2.msra.mxu0 0.0
    %98 = vmatprep.subr.mxu0 0.0
    %99 = vmatpush2.msra.mxu0 0.0
    %100 = vmatprep.subr.mxu0 0.0
    %101 = vmatpush2.msra.mxu0 0.0
    %102 = vmatprep.subr.mxu0 0.0
    %103 = vmatpush2.msra.mxu0 0.0
    %104 = vmatprep.subr.mxu0 0.0
    %105 = vmatpush2.msra.mxu0 0.0
    %106 = vmatprep.subr.mxu0 0.0
    %107 = vmatpush2.msra.mxu0 0.0
    %108 = vmatprep.subr.mxu0 0.0
    %109 = vmatpush2.msra.mxu0 0.0
    %110 = vmatprep.subr.mxu0 0.0
    %111 = vmatpush2.msra.mxu0 0.0
    %112 = vmatprep.subr.mxu0 0.0
    %113 = vmatpush2.msra.mxu0 0.0
    %114 = vmatprep.subr.mxu0 0.0
    %115 = vmatpush2.msra.mxu0 0.0
    %116 = vmatprep.mubr.f32.mxu0 0.0
    %117 = vmatmul.mubr.f32.gmra.mxu0 %v28
    %v118 = vpop.f32.mrf.mxu0
    %v119 = vadd.f32 %v50, %v118
    %v120 = vpop.f32.mrf.mxu0
    %121 = vdwg.mxu0
    %v122 = vmax.f32 %v119, 0.0
    %s123 = scalar_lea.vmem [#allocation2], 128
    %v124 = vld [vmem:[%s123] sm:$0xff]
    %v125 = vld [vmem:[%s123 + $0x8] sm:$0xff]
    %v126 = vld [vmem:[%s123 + $0x10] sm:$0xff]
    %v127 = vld [vmem:[%s123 + $0x18] sm:$0xff]
    %v128 = vld [vmem:[%s123 + $0x20] sm:$0xff]
    %v129 = vld [vmem:[%s123 + $0x28] sm:$0xff]
    %v130 = vld [vmem:[%s123 + $0x30] sm:$0xff]
    %v131 = vld [vmem:[%s123 + $0x38] sm:$0xff]
    %v132 = vld [vmem:[%s123 + $0x40] sm:$0xff]
    %v133 = vld [vmem:[%s123 + $0x48] sm:$0xff]
    %v134 = vld [vmem:[%s123 + $0x50] sm:$0xff]
    %v135 = vld [vmem:[%s123 + $0x58] sm:$0xff]
    %v136 = vld [vmem:[%s123 + $0x60] sm:$0xff]
    %v137 = vld [vmem:[%s123 + $0x68] sm:$0xff]
    %v138 = vld [vmem:[%s123 + $0x70] sm:$0xff]
    %v139 = vld [vmem:[%s123 + $0x78] sm:$0xff]
    %s140 = scalar_lea.vmem %s2, 1
    %v141 = vld [vmem:[%s140] sm:$0x1]
    %v143 = vlaneseq
    %v144 = vshrl.u32 %v143, 7
    %v145 = vsub.s32 0, %v144
    %v146 = vrot.slane %v141, %v145
    %148 = vmatprep.subr.mxu0 0.0
    %149 = vmatpush1.msra.mxu0 %v139
    %150 = vmatprep.subr.mxu0 0.0
    %151 = vmatpush1.msra.mxu0 %v138
    %152 = vmatprep.subr.mxu0 0.0
    %153 = vmatpush1.msra.mxu0 %v137
    %154 = vmatprep.subr.mxu0 0.0
    %155 = vmatpush1.msra.mxu0 %v136
    %156 = vmatprep.subr.mxu0 0.0
    %157 = vmatpush1.msra.mxu0 %v135
    %158 = vmatprep.subr.mxu0 0.0
    %159 = vmatpush1.msra.mxu0 %v134
    %160 = vmatprep.subr.mxu0 0.0
    %161 = vmatpush1.msra.mxu0 %v133
    %162 = vmatprep.subr.mxu0 0.0
    %163 = vmatpush1.msra.mxu0 %v132
    %164 = vmatprep.subr.mxu0 0.0
    %165 = vmatpush1.msra.mxu0 %v131
    %166 = vmatprep.subr.mxu0 0.0
    %167 = vmatpush1.msra.mxu0 %v130
    %168 = vmatprep.subr.mxu0 0.0
    %169 = vmatpush1.msra.mxu0 %v129
    %170 = vmatprep.subr.mxu0 0.0
    %171 = vmatpush1.msra.mxu0 %v128
    %172 = vmatprep.subr.mxu0 0.0
    %173 = vmatpush1.msra.mxu0 %v127
    %174 = vmatprep.subr.mxu0 0.0
    %175 = vmatpush1.msra.mxu0 %v126
    %176 = vmatprep.subr.mxu0 0.0
    %177 = vmatpush1.msra.mxu0 %v125
    %178 = vmatprep.subr.mxu0 0.0
    %179 = vmatpush1.msra.mxu0 %v124
    %180 = vmatprep.subr.mxu0 0.0
    %181 = vmatpush2.msra.mxu0 0.0
    %182 = vmatprep.subr.mxu0 0.0
    %183 = vmatpush2.msra.mxu0 0.0
    %184 = vmatprep.subr.mxu0 0.0
    %185 = vmatpush2.msra.mxu0 0.0
    %186 = vmatprep.subr.mxu0 0.0
    %187 = vmatpush2.msra.mxu0 0.0
    %188 = vmatprep.subr.mxu0 0.0
    %189 = vmatpush2.msra.mxu0 0.0
    %190 = vmatprep.subr.mxu0 0.0
    %191 = vmatpush2.msra.mxu0 0.0
    %192 = vmatprep.subr.mxu0 0.0
    %193 = vmatpush2.msra.mxu0 0.0
    %194 = vmatprep.subr.mxu0 0.0
    %195 = vmatpush2.msra.mxu0 0.0
    %196 = vmatprep.subr.mxu0 0.0
    %197 = vmatpush2.msra.mxu0 0.0
    %198 = vmatprep.subr.mxu0 0.0
    %199 = vmatpush2.msra.mxu0 0.0
    %200 = vmatprep.subr.mxu0 0.0
    %201 = vmatpush2.msra.mxu0 0.0
    %202 = vmatprep.subr.mxu0 0.0
    %203 = vmatpush2.msra.mxu0 0.0
    %204 = vmatprep.subr.mxu0 0.0
    %205 = vmatpush2.msra.mxu0 0.0
    %206 = vmatprep.subr.mxu0 0.0
    %207 = vmatpush2.msra.mxu0 0.0
    %208 = vmatprep.subr.mxu0 0.0
    %209 = vmatpush2.msra.mxu0 0.0
    %210 = vmatprep.subr.mxu0 0.0
    %211 = vmatpush2.msra.mxu0 0.0
    %212 = vmatprep.mubr.f32.mxu0 0.0
    %213 = vmatmul.mubr.f32.gmra.mxu0 %v122
    %v214 = vpop.f32.mrf.mxu0
    %v215 = vadd.f32 %v146, %v214
    %v216 = vpop.f32.mrf.mxu0
    %217 = vdwg.mxu0
    %v218 = vmax.f32 %v215, 0.0
    %s219 = scalar_lea.vmem [#allocation2], 256
    %v220 = vld [vmem:[%s219] sm:$0xff]
    %v221 = vld [vmem:[%s219 + $0x8] sm:$0xff]
    %v222 = vld [vmem:[%s219 + $0x10] sm:$0xff]
    %v223 = vld [vmem:[%s219 + $0x18] sm:$0xff]
    %v224 = vld [vmem:[%s219 + $0x20] sm:$0xff]
    %v225 = vld [vmem:[%s219 + $0x28] sm:$0xff]
    %v226 = vld [vmem:[%s219 + $0x30] sm:$0xff]
    %v227 = vld [vmem:[%s219 + $0x38] sm:$0xff]
    %v228 = vld [vmem:[%s219 + $0x40] sm:$0xff]
    %v229 = vld [vmem:[%s219 + $0x48] sm:$0xff]
    %v230 = vld [vmem:[%s219 + $0x50] sm:$0xff]
    %v231 = vld [vmem:[%s219 + $0x58] sm:$0xff]
    %v232 = vld [vmem:[%s219 + $0x60] sm:$0xff]
    %v233 = vld [vmem:[%s219 + $0x68] sm:$0xff]
    %v234 = vld [vmem:[%s219 + $0x70] sm:$0xff]
    %v235 = vld [vmem:[%s219 + $0x78] sm:$0xff]
    %s236 = scalar_lea.vmem %s2, 2
    %v237 = vld [vmem:[%s236] sm:$0x1]
    %v239 = vlaneseq
    %v240 = vshrl.u32 %v239, 7
    %v241 = vsub.s32 0, %v240
    %v242 = vrot.slane %v237, %v241
    %244 = vmatprep.subr.mxu0 0.0
    %245 = vmatpush1.msra.mxu0 %v235
    %246 = vmatprep.subr.mxu0 0.0
    %247 = vmatpush1.msra.mxu0 %v234
    %248 = vmatprep.subr.mxu0 0.0
    %249 = vmatpush1.msra.mxu0 %v233
    %250 = vmatprep.subr.mxu0 0.0
    %251 = vmatpush1.msra.mxu0 %v232
    %252 = vmatprep.subr.mxu0 0.0
    %253 = vmatpush1.msra.mxu0 %v231
    %254 = vmatprep.subr.mxu0 0.0
    %255 = vmatpush1.msra.mxu0 %v230
    %256 = vmatprep.subr.mxu0 0.0
    %257 = vmatpush1.msra.mxu0 %v229
    %258 = vmatprep.subr.mxu0 0.0
    %259 = vmatpush1.msra.mxu0 %v228
    %260 = vmatprep.subr.mxu0 0.0
    %261 = vmatpush1.msra.mxu0 %v227
    %262 = vmatprep.subr.mxu0 0.0
    %263 = vmatpush1.msra.mxu0 %v226
    %264 = vmatprep.subr.mxu0 0.0
    %265 = vmatpush1.msra.mxu0 %v225
    %266 = vmatprep.subr.mxu0 0.0
    %267 = vmatpush1.msra.mxu0 %v224
    %268 = vmatprep.subr.mxu0 0.0
    %269 = vmatpush1.msra.mxu0 %v223
    %270 = vmatprep.subr.mxu0 0.0
    %271 = vmatpush1.msra.mxu0 %v222
    %272 = vmatprep.subr.mxu0 0.0
    %273 = vmatpush1.msra.mxu0 %v221
    %274 = vmatprep.subr.mxu0 0.0
    %275 = vmatpush1.msra.mxu0 %v220
    %276 = vmatprep.subr.mxu0 0.0
    %277 = vmatpush2.msra.mxu0 0.0
    %278 = vmatprep.subr.mxu0 0.0
    %279 = vmatpush2.msra.mxu0 0.0
    %280 = vmatprep.subr.mxu0 0.0
    %281 = vmatpush2.msra.mxu0 0.0
    %282 = vmatprep.subr.mxu0 0.0
    %283 = vmatpush2.msra.mxu0 0.0
    %284 = vmatprep.subr.mxu0 0.0
    %285 = vmatpush2.msra.mxu0 0.0
    %286 = vmatprep.subr.mxu0 0.0
    %287 = vmatpush2.msra.mxu0 0.0
    %288 = vmatprep.subr.mxu0 0.0
    %289 = vmatpush2.msra.mxu0 0.0
    %290 = vmatprep.subr.mxu0 0.0
    %291 = vmatpush2.msra.mxu0 0.0
    %292 = vmatprep.subr.mxu0 0.0
    %293 = vmatpush2.msra.mxu0 0.0
    %294 = vmatprep.subr.mxu0 0.0
    %295 = vmatpush2.msra.mxu0 0.0
    %296 = vmatprep.subr.mxu0 0.0
    %297 = vmatpush2.msra.mxu0 0.0
    %298 = vmatprep.subr.mxu0 0.0
    %299 = vmatpush2.msra.mxu0 0.0
    %300 = vmatprep.subr.mxu0 0.0
    %301 = vmatpush2.msra.mxu0 0.0
    %302 = vmatprep.subr.mxu0 0.0
    %303 = vmatpush2.msra.mxu0 0.0
    %304 = vmatprep.subr.mxu0 0.0
    %305 = vmatpush2.msra.mxu0 0.0
    %306 = vmatprep.subr.mxu0 0.0
    %307 = vmatpush2.msra.mxu0 0.0
    %308 = vmatprep.mubr.f32.mxu0 0.0
    %309 = vmatmul.mubr.f32.gmra.mxu0 %v218
    %v310 = vpop.f32.mrf.mxu0
    %v311 = vadd.f32 %v242, %v310
    %v312 = vpop.f32.mrf.mxu0
    %313 = vdwg.mxu0
    %v314 = vmax.f32 %v311, 0.0
    %s315 = scalar_lea.vmem [#allocation2], 384
    %v316 = vld [vmem:[%s315] sm:$0xff]
    %v317 = vld [vmem:[%s315 + $0x8] sm:$0xff]
    %v318 = vld [vmem:[%s315 + $0x10] sm:$0xff]
    %v319 = vld [vmem:[%s315 + $0x18] sm:$0xff]
    %v320 = vld [vmem:[%s315 + $0x20] sm:$0xff]
    %v321 = vld [vmem:[%s315 + $0x28] sm:$0xff]
    %v322 = vld [vmem:[%s315 + $0x30] sm:$0xff]
    %v323 = vld [vmem:[%s315 + $0x38] sm:$0xff]
    %v324 = vld [vmem:[%s315 + $0x40] sm:$0xff]
    %v325 = vld [vmem:[%s315 + $0x48] sm:$0xff]
    %v326 = vld [vmem:[%s315 + $0x50] sm:$0xff]
    %v327 = vld [vmem:[%s315 + $0x58] sm:$0xff]
    %v328 = vld [vmem:[%s315 + $0x60] sm:$0xff]
    %v329 = vld [vmem:[%s315 + $0x68] sm:$0xff]
    %v330 = vld [vmem:[%s315 + $0x70] sm:$0xff]
    %v331 = vld [vmem:[%s315 + $0x78] sm:$0xff]
    %s332 = scalar_lea.vmem %s2, 3
    %v333 = vld [vmem:[%s332] sm:$0x1]
    %v335 = vlaneseq
    %v336 = vshrl.u32 %v335, 7
    %v337 = vsub.s32 0, %v336
    %v338 = vrot.slane %v333, %v337
    %340 = vmatprep.subr.mxu0 0.0
    %341 = vmatpush1.msra.mxu0 %v331
    %342 = vmatprep.subr.mxu0 0.0
    %343 = vmatpush1.msra.mxu0 %v330
    %344 = vmatprep.subr.mxu0 0.0
    %345 = vmatpush1.msra.mxu0 %v329
    %346 = vmatprep.subr.mxu0 0.0
    %347 = vmatpush1.msra.mxu0 %v328
    %348 = vmatprep.subr.mxu0 0.0
    %349 = vmatpush1.msra.mxu0 %v327
    %350 = vmatprep.subr.mxu0 0.0
    %351 = vmatpush1.msra.mxu0 %v326
    %352 = vmatprep.subr.mxu0 0.0
    %353 = vmatpush1.msra.mxu0 %v325
    %354 = vmatprep.subr.mxu0 0.0
    %355 = vmatpush1.msra.mxu0 %v324
    %356 = vmatprep.subr.mxu0 0.0
    %357 = vmatpush1.msra.mxu0 %v323
    %358 = vmatprep.subr.mxu0 0.0
    %359 = vmatpush1.msra.mxu0 %v322
    %360 = vmatprep.subr.mxu0 0.0
    %361 = vmatpush1.msra.mxu0 %v321
    %362 = vmatprep.subr.mxu0 0.0
    %363 = vmatpush1.msra.mxu0 %v320
    %364 = vmatprep.subr.mxu0 0.0
    %365 = vmatpush1.msra.mxu0 %v319
    %366 = vmatprep.subr.mxu0 0.0
    %367 = vmatpush1.msra.mxu0 %v318
    %368 = vmatprep.subr.mxu0 0.0
    %369 = vmatpush1.msra.mxu0 %v317
    %370 = vmatprep.subr.mxu0 0.0
    %371 = vmatpush1.msra.mxu0 %v316
    %372 = vmatprep.subr.mxu0 0.0
    %373 = vmatpush2.msra.mxu0 0.0
    %374 = vmatprep.subr.mxu0 0.0
    %375 = vmatpush2.msra.mxu0 0.0
    %376 = vmatprep.subr.mxu0 0.0
    %377 = vmatpush2.msra.mxu0 0.0
    %378 = vmatprep.subr.mxu0 0.0
    %379 = vmatpush2.msra.mxu0 0.0
    %380 = vmatprep.subr.mxu0 0.0
    %381 = vmatpush2.msra.mxu0 0.0
    %382 = vmatprep.subr.mxu0 0.0
    %383 = vmatpush2.msra.mxu0 0.0
    %384 = vmatprep.subr.mxu0 0.0
    %385 = vmatpush2.msra.mxu0 0.0
    %386 = vmatprep.subr.mxu0 0.0
    %387 = vmatpush2.msra.mxu0 0.0
    %388 = vmatprep.subr.mxu0 0.0
    %389 = vmatpush2.msra.mxu0 0.0
    %390 = vmatprep.subr.mxu0 0.0
    %391 = vmatpush2.msra.mxu0 0.0
    %392 = vmatprep.subr.mxu0 0.0
    %393 = vmatpush2.msra.mxu0 0.0
    %394 = vmatprep.subr.mxu0 0.0
    %395 = vmatpush2.msra.mxu0 0.0
    %396 = vmatprep.subr.mxu0 0.0
    %397 = vmatpush2.msra.mxu0 0.0
    %398 = vmatprep.subr.mxu0 0.0
    %399 = vmatpush2.msra.mxu0 0.0
    %400 = vmatprep.subr.mxu0 0.0
    %401 = vmatpush2.msra.mxu0 0.0
    %402 = vmatprep.subr.mxu0 0.0
    %403 = vmatpush2.msra.mxu0 0.0
    %404 = vmatprep.mubr.f32.mxu0 0.0
    %405 = vmatmul.mubr.f32.gmra.mxu0 %v314
    %v406 = vpop.f32.mrf.mxu0
    %v407 = vadd.f32 %v338, %v406
    %v408 = vpop.f32.mrf.mxu0
    %409 = vdwg.mxu0
    %v410 = vmax.f32 %v407, 0.0
    %s411 = scalar_lea.vmem [#allocation2], 512
    %v412 = vld [vmem:[%s411] sm:$0xff]
    %v413 = vld [vmem:[%s411 + $0x8] sm:$0xff]
    %v414 = vld [vmem:[%s411 + $0x10] sm:$0xff]
    %v415 = vld [vmem:[%s411 + $0x18] sm:$0xff]
    %v416 = vld [vmem:[%s411 + $0x20] sm:$0xff]
    %v417 = vld [vmem:[%s411 + $0x28] sm:$0xff]
    %v418 = vld [vmem:[%s411 + $0x30] sm:$0xff]
    %v419 = vld [vmem:[%s411 + $0x38] sm:$0xff]
    %v420 = vld [vmem:[%s411 + $0x40] sm:$0xff]
    %v421 = vld [vmem:[%s411 + $0x48] sm:$0xff]
    %v422 = vld [vmem:[%s411 + $0x50] sm:$0xff]
    %v423 = vld [vmem:[%s411 + $0x58] sm:$0xff]
    %v424 = vld [vmem:[%s411 + $0x60] sm:$0xff]
    %v425 = vld [vmem:[%s411 + $0x68] sm:$0xff]
    %v426 = vld [vmem:[%s411 + $0x70] sm:$0xff]
    %v427 = vld [vmem:[%s411 + $0x78] sm:$0xff]
    %s428 = scalar_lea.vmem %s2, 4
    %v429 = vld [vmem:[%s428] sm:$0x1]
    %v431 = vlaneseq
    %v432 = vshrl.u32 %v431, 7
    %v433 = vsub.s32 0, %v432
    %v434 = vrot.slane %v429, %v433
    %436 = vmatprep.subr.mxu0 0.0
    %437 = vmatpush1.msra.mxu0 %v427
    %438 = vmatprep.subr.mxu0 0.0
    %439 = vmatpush1.msra.mxu0 %v426
    %440 = vmatprep.subr.mxu0 0.0
    %441 = vmatpush1.msra.mxu0 %v425
    %442 = vmatprep.subr.mxu0 0.0
    %443 = vmatpush1.msra.mxu0 %v424
    %444 = vmatprep.subr.mxu0 0.0
    %445 = vmatpush1.msra.mxu0 %v423
    %446 = vmatprep.subr.mxu0 0.0
    %447 = vmatpush1.msra.mxu0 %v422
    %448 = vmatprep.subr.mxu0 0.0
    %449 = vmatpush1.msra.mxu0 %v421
    %450 = vmatprep.subr.mxu0 0.0
    %451 = vmatpush1.msra.mxu0 %v420
    %452 = vmatprep.subr.mxu0 0.0
    %453 = vmatpush1.msra.mxu0 %v419
    %454 = vmatprep.subr.mxu0 0.0
    %455 = vmatpush1.msra.mxu0 %v418
    %456 = vmatprep.subr.mxu0 0.0
    %457 = vmatpush1.msra.mxu0 %v417
    %458 = vmatprep.subr.mxu0 0.0
    %459 = vmatpush1.msra.mxu0 %v416
    %460 = vmatprep.subr.mxu0 0.0
    %461 = vmatpush1.msra.mxu0 %v415
    %462 = vmatprep.subr.mxu0 0.0
    %463 = vmatpush1.msra.mxu0 %v414
    %464 = vmatprep.subr.mxu0 0.0
    %465 = vmatpush1.msra.mxu0 %v413
    %466 = vmatprep.subr.mxu0 0.0
    %467 = vmatpush1.msra.mxu0 %v412
    %468 = vmatprep.subr.mxu0 0.0
    %469 = vmatpush2.msra.mxu0 0.0
    %470 = vmatprep.subr.mxu0 0.0
    %471 = vmatpush2.msra.mxu0 0.0
    %472 = vmatprep.subr.mxu0 0.0
    %473 = vmatpush2.msra.mxu0 0.0
    %474 = vmatprep.subr.mxu0 0.0
    %475 = vmatpush2.msra.mxu0 0.0
    %476 = vmatprep.subr.mxu0 0.0
    %477 = vmatpush2.msra.mxu0 0.0
    %478 = vmatprep.subr.mxu0 0.0
    %479 = vmatpush2.msra.mxu0 0.0
    %480 = vmatprep.subr.mxu0 0.0
    %481 = vmatpush2.msra.mxu0 0.0
    %482 = vmatprep.subr.mxu0 0.0
    %483 = vmatpush2.msra.mxu0 0.0
    %484 = vmatprep.subr.mxu0 0.0
    %485 = vmatpush2.msra.mxu0 0.0
    %486 = vmatprep.subr.mxu0 0.0
    %487 = vmatpush2.msra.mxu0 0.0
    %488 = vmatprep.subr.mxu0 0.0
    %489 = vmatpush2.msra.mxu0 0.0
    %490 = vmatprep.subr.mxu0 0.0
    %491 = vmatpush2.msra.mxu0 0.0
    %492 = vmatprep.subr.mxu0 0.0
    %493 = vmatpush2.msra.mxu0 0.0
    %494 = vmatprep.subr.mxu0 0.0
    %495 = vmatpush2.msra.mxu0 0.0
    %496 = vmatprep.subr.mxu0 0.0
    %497 = vmatpush2.msra.mxu0 0.0
    %498 = vmatprep.subr.mxu0 0.0
    %499 = vmatpush2.msra.mxu0 0.0
    %500 = vmatprep.mubr.f32.mxu0 0.0
    %501 = vmatmul.mubr.f32.gmra.mxu0 %v410
    %v502 = vpop.f32.mrf.mxu0
    %v503 = vadd.f32 %v434, %v502
    %v504 = vpop.f32.mrf.mxu0
    %505 = vdwg.mxu0
    %v506 = vmax.f32 %v503, 0.0
    %s507 = scalar_lea.vmem [#allocation2], 640
    %v508 = vld [vmem:[%s507] sm:$0xff]
    %v509 = vld [vmem:[%s507 + $0x8] sm:$0xff]
    %v510 = vld [vmem:[%s507 + $0x10] sm:$0xff]
    %v511 = vld [vmem:[%s507 + $0x18] sm:$0xff]
    %v512 = vld [vmem:[%s507 + $0x20] sm:$0xff]
    %v513 = vld [vmem:[%s507 + $0x28] sm:$0xff]
    %v514 = vld [vmem:[%s507 + $0x30] sm:$0xff]
    %v515 = vld [vmem:[%s507 + $0x38] sm:$0xff]
    %v516 = vld [vmem:[%s507 + $0x40] sm:$0xff]
    %v517 = vld [vmem:[%s507 + $0x48] sm:$0xff]
    %v518 = vld [vmem:[%s507 + $0x50] sm:$0xff]
    %v519 = vld [vmem:[%s507 + $0x58] sm:$0xff]
    %v520 = vld [vmem:[%s507 + $0x60] sm:$0xff]
    %v521 = vld [vmem:[%s507 + $0x68] sm:$0xff]
    %v522 = vld [vmem:[%s507 + $0x70] sm:$0xff]
    %v523 = vld [vmem:[%s507 + $0x78] sm:$0xff]
    %s524 = scalar_lea.vmem %s2, 5
    %v525 = vld [vmem:[%s524] sm:$0x1]
    %v527 = vlaneseq
    %v528 = vshrl.u32 %v527, 7
    %v529 = vsub.s32 0, %v528
    %v530 = vrot.slane %v525, %v529
    %532 = vmatprep.subr.mxu0 0.0
    %533 = vmatpush1.msra.mxu0 %v523
    %534 = vmatprep.subr.mxu0 0.0
    %535 = vmatpush1.msra.mxu0 %v522
    %536 = vmatprep.subr.mxu0 0.0
    %537 = vmatpush1.msra.mxu0 %v521
    %538 = vmatprep.subr.mxu0 0.0
    %539 = vmatpush1.msra.mxu0 %v520
    %540 = vmatprep.subr.mxu0 0.0
    %541 = vmatpush1.msra.mxu0 %v519
    %542 = vmatprep.subr.mxu0 0.0
    %543 = vmatpush1.msra.mxu0 %v518
    %544 = vmatprep.subr.mxu0 0.0
    %545 = vmatpush1.msra.mxu0 %v517
    %546 = vmatprep.subr.mxu0 0.0
    %547 = vmatpush1.msra.mxu0 %v516
    %548 = vmatprep.subr.mxu0 0.0
    %549 = vmatpush1.msra.mxu0 %v515
    %550 = vmatprep.subr.mxu0 0.0
    %551 = vmatpush1.msra.mxu0 %v514
    %552 = vmatprep.subr.mxu0 0.0
    %553 = vmatpush1.msra.mxu0 %v513
    %554 = vmatprep.subr.mxu0 0.0
    %555 = vmatpush1.msra.mxu0 %v512
    %556 = vmatprep.subr.mxu0 0.0
    %557 = vmatpush1.msra.mxu0 %v511
    %558 = vmatprep.subr.mxu0 0.0
    %559 = vmatpush1.msra.mxu0 %v510
    %560 = vmatprep.subr.mxu0 0.0
    %561 = vmatpush1.msra.mxu0 %v509
    %562 = vmatprep.subr.mxu0 0.0
    %563 = vmatpush1.msra.mxu0 %v508
    %564 = vmatprep.subr.mxu0 0.0
    %565 = vmatpush2.msra.mxu0 0.0
    %566 = vmatprep.subr.mxu0 0.0
    %567 = vmatpush2.msra.mxu0 0.0
    %568 = vmatprep.subr.mxu0 0.0
    %569 = vmatpush2.msra.mxu0 0.0
    %570 = vmatprep.subr.mxu0 0.0
    %571 = vmatpush2.msra.mxu0 0.0
    %572 = vmatprep.subr.mxu0 0.0
    %573 = vmatpush2.msra.mxu0 0.0
    %574 = vmatprep.subr.mxu0 0.0
    %575 = vmatpush2.msra.mxu0 0.0
    %576 = vmatprep.subr.mxu0 0.0
    %577 = vmatpush2.msra.mxu0 0.0
    %578 = vmatprep.subr.mxu0 0.0
    %579 = vmatpush2.msra.mxu0 0.0
    %580 = vmatprep.subr.mxu0 0.0
    %581 = vmatpush2.msra.mxu0 0.0
    %582 = vmatprep.subr.mxu0 0.0
    %583 = vmatpush2.msra.mxu0 0.0
    %584 = vmatprep.subr.mxu0 0.0
    %585 = vmatpush2.msra.mxu0 0.0
    %586 = vmatprep.subr.mxu0 0.0
    %587 = vmatpush2.msra.mxu0 0.0
    %588 = vmatprep.subr.mxu0 0.0
    %589 = vmatpush2.msra.mxu0 0.0
    %590 = vmatprep.subr.mxu0 0.0
    %591 = vmatpush2.msra.mxu0 0.0
    %592 = vmatprep.subr.mxu0 0.0
    %593 = vmatpush2.msra.mxu0 0.0
    %594 = vmatprep.subr.mxu0 0.0
    %595 = vmatpush2.msra.mxu0 0.0
    %596 = vmatprep.mubr.f32.mxu0 0.0
    %597 = vmatmul.mubr.f32.gmra.mxu0 %v506
    %v598 = vpop.f32.mrf.mxu0
    %v599 = vadd.f32 %v530, %v598
    %v600 = vpop.f32.mrf.mxu0
    %601 = vdwg.mxu0
    %v602 = vmax.f32 %v599, 0.0
    %s603 = scalar_lea.vmem [#allocation2], 768
    %v604 = vld [vmem:[%s603] sm:$0xff]
    %v605 = vld [vmem:[%s603 + $0x8] sm:$0xff]
    %v606 = vld [vmem:[%s603 + $0x10] sm:$0xff]
    %v607 = vld [vmem:[%s603 + $0x18] sm:$0xff]
    %v608 = vld [vmem:[%s603 + $0x20] sm:$0xff]
    %v609 = vld [vmem:[%s603 + $0x28] sm:$0xff]
    %v610 = vld [vmem:[%s603 + $0x30] sm:$0xff]
    %v611 = vld [vmem:[%s603 + $0x38] sm:$0xff]
    %v612 = vld [vmem:[%s603 + $0x40] sm:$0xff]
    %v613 = vld [vmem:[%s603 + $0x48] sm:$0xff]
    %v614 = vld [vmem:[%s603 + $0x50] sm:$0xff]
    %v615 = vld [vmem:[%s603 + $0x58] sm:$0xff]
    %v616 = vld [vmem:[%s603 + $0x60] sm:$0xff]
    %v617 = vld [vmem:[%s603 + $0x68] sm:$0xff]
    %v618 = vld [vmem:[%s603 + $0x70] sm:$0xff]
    %v619 = vld [vmem:[%s603 + $0x78] sm:$0xff]
    %s620 = scalar_lea.vmem %s2, 6
    %v621 = vld [vmem:[%s620] sm:$0x1]
    %v623 = vlaneseq
    %v624 = vshrl.u32 %v623, 7
    %v625 = vsub.s32 0, %v624
    %v626 = vrot.slane %v621, %v625
    %628 = vmatprep.subr.mxu0 0.0
    %629 = vmatpush1.msra.mxu0 %v619
    %630 = vmatprep.subr.mxu0 0.0
    %631 = vmatpush1.msra.mxu0 %v618
    %632 = vmatprep.subr.mxu0 0.0
    %633 = vmatpush1.msra.mxu0 %v617
    %634 = vmatprep.subr.mxu0 0.0
    %635 = vmatpush1.msra.mxu0 %v616
    %636 = vmatprep.subr.mxu0 0.0
    %637 = vmatpush1.msra.mxu0 %v615
    %638 = vmatprep.subr.mxu0 0.0
    %639 = vmatpush1.msra.mxu0 %v614
    %640 = vmatprep.subr.mxu0 0.0
    %641 = vmatpush1.msra.mxu0 %v613
    %642 = vmatprep.subr.mxu0 0.0
    %643 = vmatpush1.msra.mxu0 %v612
    %644 = vmatprep.subr.mxu0 0.0
    %645 = vmatpush1.msra.mxu0 %v611
    %646 = vmatprep.subr.mxu0 0.0
    %647 = vmatpush1.msra.mxu0 %v610
    %648 = vmatprep.subr.mxu0 0.0
    %649 = vmatpush1.msra.mxu0 %v609
    %650 = vmatprep.subr.mxu0 0.0
    %651 = vmatpush1.msra.mxu0 %v608
    %652 = vmatprep.subr.mxu0 0.0
    %653 = vmatpush1.msra.mxu0 %v607
    %654 = vmatprep.subr.mxu0 0.0
    %655 = vmatpush1.msra.mxu0 %v606
    %656 = vmatprep.subr.mxu0 0.0
    %657 = vmatpush1.msra.mxu0 %v605
    %658 = vmatprep.subr.mxu0 0.0
    %659 = vmatpush1.msra.mxu0 %v604
    %660 = vmatprep.subr.mxu0 0.0
    %661 = vmatpush2.msra.mxu0 0.0
    %662 = vmatprep.subr.mxu0 0.0
    %663 = vmatpush2.msra.mxu0 0.0
    %664 = vmatprep.subr.mxu0 0.0
    %665 = vmatpush2.msra.mxu0 0.0
    %666 = vmatprep.subr.mxu0 0.0
    %667 = vmatpush2.msra.mxu0 0.0
    %668 = vmatprep.subr.mxu0 0.0
    %669 = vmatpush2.msra.mxu0 0.0
    %670 = vmatprep.subr.mxu0 0.0
    %671 = vmatpush2.msra.mxu0 0.0
    %672 = vmatprep.subr.mxu0 0.0
    %673 = vmatpush2.msra.mxu0 0.0
    %674 = vmatprep.subr.mxu0 0.0
    %675 = vmatpush2.msra.mxu0 0.0
    %676 = vmatprep.subr.mxu0 0.0
    %677 = vmatpush2.msra.mxu0 0.0
    %678 = vmatprep.subr.mxu0 0.0
    %679 = vmatpush2.msra.mxu0 0.0
    %680 = vmatprep.subr.mxu0 0.0
    %681 = vmatpush2.msra.mxu0 0.0
    %682 = vmatprep.subr.mxu0 0.0
    %683 = vmatpush2.msra.mxu0 0.0
    %684 = vmatprep.subr.mxu0 0.0
    %685 = vmatpush2.msra.mxu0 0.0
    %686 = vmatprep.subr.mxu0 0.0
    %687 = vmatpush2.msra.mxu0 0.0
    %688 = vmatprep.subr.mxu0 0.0
    %689 = vmatpush2.msra.mxu0 0.0
    %690 = vmatprep.subr.mxu0 0.0
    %691 = vmatpush2.msra.mxu0 0.0
    %692 = vmatprep.mubr.f32.mxu0 0.0
    %693 = vmatmul.mubr.f32.gmra.mxu0 %v602
    %v694 = vpop.f32.mrf.mxu0
    %v695 = vadd.f32 %v626, %v694
    %v696 = vpop.f32.mrf.mxu0
    %697 = vdwg.mxu0
    %v698 = vmax.f32 %v695, 0.0
    %s699 = scalar_lea.vmem [#allocation2], 896
    %v700 = vld [vmem:[%s699] sm:$0xff]
    %v701 = vld [vmem:[%s699 + $0x8] sm:$0xff]
    %v702 = vld [vmem:[%s699 + $0x10] sm:$0xff]
    %v703 = vld [vmem:[%s699 + $0x18] sm:$0xff]
    %v704 = vld [vmem:[%s699 + $0x20] sm:$0xff]
    %v705 = vld [vmem:[%s699 + $0x28] sm:$0xff]
    %v706 = vld [vmem:[%s699 + $0x30] sm:$0xff]
    %v707 = vld [vmem:[%s699 + $0x38] sm:$0xff]
    %v708 = vld [vmem:[%s699 + $0x40] sm:$0xff]
    %v709 = vld [vmem:[%s699 + $0x48] sm:$0xff]
    %v710 = vld [vmem:[%s699 + $0x50] sm:$0xff]
    %v711 = vld [vmem:[%s699 + $0x58] sm:$0xff]
    %v712 = vld [vmem:[%s699 + $0x60] sm:$0xff]
    %v713 = vld [vmem:[%s699 + $0x68] sm:$0xff]
    %v714 = vld [vmem:[%s699 + $0x70] sm:$0xff]
    %v715 = vld [vmem:[%s699 + $0x78] sm:$0xff]
    %s716 = scalar_lea.vmem %s2, 7
    %v717 = vld [vmem:[%s716] sm:$0x1]
    %v719 = vlaneseq
    %v720 = vshrl.u32 %v719, 7
    %v721 = vsub.s32 0, %v720
    %v722 = vrot.slane %v717, %v721
    %724 = vmatprep.subr.mxu0 0.0
    %725 = vmatpush1.msra.mxu0 %v715
    %726 = vmatprep.subr.mxu0 0.0
    %727 = vmatpush1.msra.mxu0 %v714
    %728 = vmatprep.subr.mxu0 0.0
    %729 = vmatpush1.msra.mxu0 %v713
    %730 = vmatprep.subr.mxu0 0.0
    %731 = vmatpush1.msra.mxu0 %v712
    %732 = vmatprep.subr.mxu0 0.0
    %733 = vmatpush1.msra.mxu0 %v711
    %734 = vmatprep.subr.mxu0 0.0
    %735 = vmatpush1.msra.mxu0 %v710
    %736 = vmatprep.subr.mxu0 0.0
    %737 = vmatpush1.msra.mxu0 %v709
    %738 = vmatprep.subr.mxu0 0.0
    %739 = vmatpush1.msra.mxu0 %v708
    %740 = vmatprep.subr.mxu0 0.0
    %741 = vmatpush1.msra.mxu0 %v707
    %742 = vmatprep.subr.mxu0 0.0
    %743 = vmatpush1.msra.mxu0 %v706
    %744 = vmatprep.subr.mxu0 0.0
    %745 = vmatpush1.msra.mxu0 %v705
    %746 = vmatprep.subr.mxu0 0.0
    %747 = vmatpush1.msra.mxu0 %v704
    %748 = vmatprep.subr.mxu0 0.0
    %749 = vmatpush1.msra.mxu0 %v703
    %750 = vmatprep.subr.mxu0 0.0
    %751 = vmatpush1.msra.mxu0 %v702
    %752 = vmatprep.subr.mxu0 0.0
    %753 = vmatpush1.msra.mxu0 %v701
    %754 = vmatprep.subr.mxu0 0.0
    %755 = vmatpush1.msra.mxu0 %v700
    %756 = vmatprep.subr.mxu0 0.0
    %757 = vmatpush2.msra.mxu0 0.0
    %758 = vmatprep.subr.mxu0 0.0
    %759 = vmatpush2.msra.mxu0 0.0
    %760 = vmatprep.subr.mxu0 0.0
    %761 = vmatpush2.msra.mxu0 0.0
    %762 = vmatprep.subr.mxu0 0.0
    %763 = vmatpush2.msra.mxu0 0.0
    %764 = vmatprep.subr.mxu0 0.0
    %765 = vmatpush2.msra.mxu0 0.0
    %766 = vmatprep.subr.mxu0 0.0
    %767 = vmatpush2.msra.mxu0 0.0
    %768 = vmatprep.subr.mxu0 0.0
    %769 = vmatpush2.msra.mxu0 0.0
    %770 = vmatprep.subr.mxu0 0.0
    %771 = vmatpush2.msra.mxu0 0.0
    %772 = vmatprep.subr.mxu0 0.0
    %773 = vmatpush2.msra.mxu0 0.0
    %774 = vmatprep.subr.mxu0 0.0
    %775 = vmatpush2.msra.mxu0 0.0
    %776 = vmatprep.subr.mxu0 0.0
    %777 = vmatpush2.msra.mxu0 0.0
    %778 = vmatprep.subr.mxu0 0.0
    %779 = vmatpush2.msra.mxu0 0.0
    %780 = vmatprep.subr.mxu0 0.0
    %781 = vmatpush2.msra.mxu0 0.0
    %782 = vmatprep.subr.mxu0 0.0
    %783 = vmatpush2.msra.mxu0 0.0
    %784 = vmatprep.subr.mxu0 0.0
    %785 = vmatpush2.msra.mxu0 0.0
    %786 = vmatprep.subr.mxu0 0.0
    %787 = vmatpush2.msra.mxu0 0.0
    %788 = vmatprep.mubr.f32.mxu0 0.0
    %789 = vmatmul.mubr.f32.gmra.mxu0 %v698
    %v790 = vpop.f32.mrf.mxu0
    %v791 = vadd.f32 %v722, %v790
    %v792 = vpop.f32.mrf.mxu0
    %793 = vdwg.mxu0
    %v794 = vmax.f32 %v791, 0.0
    %s795 = scalar_lea.vmem [#allocation2], 1024
    %v796 = vld [vmem:[%s795] sm:$0xff]
    %v797 = vld [vmem:[%s795 + $0x8] sm:$0xff]
    %v798 = vld [vmem:[%s795 + $0x10] sm:$0xff]
    %v799 = vld [vmem:[%s795 + $0x18] sm:$0xff]
    %v800 = vld [vmem:[%s795 + $0x20] sm:$0xff]
    %v801 = vld [vmem:[%s795 + $0x28] sm:$0xff]
    %v802 = vld [vmem:[%s795 + $0x30] sm:$0xff]
    %v803 = vld [vmem:[%s795 + $0x38] sm:$0xff]
    %v804 = vld [vmem:[%s795 + $0x40] sm:$0xff]
    %v805 = vld [vmem:[%s795 + $0x48] sm:$0xff]
    %v806 = vld [vmem:[%s795 + $0x50] sm:$0xff]
    %v807 = vld [vmem:[%s795 + $0x58] sm:$0xff]
    %v808 = vld [vmem:[%s795 + $0x60] sm:$0xff]
    %v809 = vld [vmem:[%s795 + $0x68] sm:$0xff]
    %v810 = vld [vmem:[%s795 + $0x70] sm:$0xff]
    %v811 = vld [vmem:[%s795 + $0x78] sm:$0xff]
    %s812 = scalar_lea.vmem %s2, 8
    %v813 = vld [vmem:[%s812] sm:$0x1]
    %v815 = vlaneseq
    %v816 = vshrl.u32 %v815, 7
    %v817 = vsub.s32 0, %v816
    %v818 = vrot.slane %v813, %v817
    %820 = vmatprep.subr.mxu0 0.0
    %821 = vmatpush1.msra.mxu0 %v811
    %822 = vmatprep.subr.mxu0 0.0
    %823 = vmatpush1.msra.mxu0 %v810
    %824 = vmatprep.subr.mxu0 0.0
    %825 = vmatpush1.msra.mxu0 %v809
    %826 = vmatprep.subr.mxu0 0.0
    %827 = vmatpush1.msra.mxu0 %v808
    %828 = vmatprep.subr.mxu0 0.0
    %829 = vmatpush1.msra.mxu0 %v807
    %830 = vmatprep.subr.mxu0 0.0
    %831 = vmatpush1.msra.mxu0 %v806
    %832 = vmatprep.subr.mxu0 0.0
    %833 = vmatpush1.msra.mxu0 %v805
    %834 = vmatprep.subr.mxu0 0.0
    %835 = vmatpush1.msra.mxu0 %v804
    %836 = vmatprep.subr.mxu0 0.0
    %837 = vmatpush1.msra.mxu0 %v803
    %838 = vmatprep.subr.mxu0 0.0
    %839 = vmatpush1.msra.mxu0 %v802
    %840 = vmatprep.subr.mxu0 0.0
    %841 = vmatpush1.msra.mxu0 %v801
    %842 = vmatprep.subr.mxu0 0.0
    %843 = vmatpush1.msra.mxu0 %v800
    %844 = vmatprep.subr.mxu0 0.0
    %845 = vmatpush1.msra.mxu0 %v799
    %846 = vmatprep.subr.mxu0 0.0
    %847 = vmatpush1.msra.mxu0 %v798
    %848 = vmatprep.subr.mxu0 0.0
    %849 = vmatpush1.msra.mxu0 %v797
    %850 = vmatprep.subr.mxu0 0.0
    %851 = vmatpush1.msra.mxu0 %v796
    %852 = vmatprep.subr.mxu0 0.0
    %853 = vmatpush2.msra.mxu0 0.0
    %854 = vmatprep.subr.mxu0 0.0
    %855 = vmatpush2.msra.mxu0 0.0
    %856 = vmatprep.subr.mxu0 0.0
    %857 = vmatpush2.msra.mxu0 0.0
    %858 = vmatprep.subr.mxu0 0.0
    %859 = vmatpush2.msra.mxu0 0.0
    %860 = vmatprep.subr.mxu0 0.0
    %861 = vmatpush2.msra.mxu0 0.0
    %862 = vmatprep.subr.mxu0 0.0
    %863 = vmatpush2.msra.mxu0 0.0
    %864 = vmatprep.subr.mxu0 0.0
    %865 = vmatpush2.msra.mxu0 0.0
    %866 = vmatprep.subr.mxu0 0.0
    %867 = vmatpush2.msra.mxu0 0.0
    %868 = vmatprep.subr.mxu0 0.0
    %869 = vmatpush2.msra.mxu0 0.0
    %870 = vmatprep.subr.mxu0 0.0
    %871 = vmatpush2.msra.mxu0 0.0
    %872 = vmatprep.subr.mxu0 0.0
    %873 = vmatpush2.msra.mxu0 0.0
    %874 = vmatprep.subr.mxu0 0.0
    %875 = vmatpush2.msra.mxu0 0.0
    %876 = vmatprep.subr.mxu0 0.0
    %877 = vmatpush2.msra.mxu0 0.0
    %878 = vmatprep.subr.mxu0 0.0
    %879 = vmatpush2.msra.mxu0 0.0
    %880 = vmatprep.subr.mxu0 0.0
    %881 = vmatpush2.msra.mxu0 0.0
    %882 = vmatprep.subr.mxu0 0.0
    %883 = vmatpush2.msra.mxu0 0.0
    %884 = vmatprep.mubr.f32.mxu0 0.0
    %885 = vmatmul.mubr.f32.gmra.mxu0 %v794
    %v886 = vpop.f32.mrf.mxu0
    %v887 = vadd.f32 %v818, %v886
    %v888 = vpop.f32.mrf.mxu0
    %889 = vdwg.mxu0
    %v890 = vmax.f32 %v887, 0.0
    %s891 = scalar_lea.vmem [#allocation2], 1152
    %v892 = vld [vmem:[%s891] sm:$0xff]
    %v893 = vld [vmem:[%s891 + $0x8] sm:$0xff]
    %v894 = vld [vmem:[%s891 + $0x10] sm:$0xff]
    %v895 = vld [vmem:[%s891 + $0x18] sm:$0xff]
    %v896 = vld [vmem:[%s891 + $0x20] sm:$0xff]
    %v897 = vld [vmem:[%s891 + $0x28] sm:$0xff]
    %v898 = vld [vmem:[%s891 + $0x30] sm:$0xff]
    %v899 = vld [vmem:[%s891 + $0x38] sm:$0xff]
    %v900 = vld [vmem:[%s891 + $0x40] sm:$0xff]
    %v901 = vld [vmem:[%s891 + $0x48] sm:$0xff]
    %v902 = vld [vmem:[%s891 + $0x50] sm:$0xff]
    %v903 = vld [vmem:[%s891 + $0x58] sm:$0xff]
    %v904 = vld [vmem:[%s891 + $0x60] sm:$0xff]
    %v905 = vld [vmem:[%s891 + $0x68] sm:$0xff]
    %v906 = vld [vmem:[%s891 + $0x70] sm:$0xff]
    %v907 = vld [vmem:[%s891 + $0x78] sm:$0xff]
    %s908 = scalar_lea.vmem %s2, 9
    %v909 = vld [vmem:[%s908] sm:$0x1]
    %v911 = vlaneseq
    %v912 = vshrl.u32 %v911, 7
    %v913 = vsub.s32 0, %v912
    %v914 = vrot.slane %v909, %v913
    %916 = vmatprep.subr.mxu0 0.0
    %917 = vmatpush1.msra.mxu0 %v907
    %918 = vmatprep.subr.mxu0 0.0
    %919 = vmatpush1.msra.mxu0 %v906
    %920 = vmatprep.subr.mxu0 0.0
    %921 = vmatpush1.msra.mxu0 %v905
    %922 = vmatprep.subr.mxu0 0.0
    %923 = vmatpush1.msra.mxu0 %v904
    %924 = vmatprep.subr.mxu0 0.0
    %925 = vmatpush1.msra.mxu0 %v903
    %926 = vmatprep.subr.mxu0 0.0
    %927 = vmatpush1.msra.mxu0 %v902
    %928 = vmatprep.subr.mxu0 0.0
    %929 = vmatpush1.msra.mxu0 %v901
    %930 = vmatprep.subr.mxu0 0.0
    %931 = vmatpush1.msra.mxu0 %v900
    %932 = vmatprep.subr.mxu0 0.0
    %933 = vmatpush1.msra.mxu0 %v899
    %934 = vmatprep.subr.mxu0 0.0
    %935 = vmatpush1.msra.mxu0 %v898
    %936 = vmatprep.subr.mxu0 0.0
    %937 = vmatpush1.msra.mxu0 %v897
    %938 = vmatprep.subr.mxu0 0.0
    %939 = vmatpush1.msra.mxu0 %v896
    %940 = vmatprep.subr.mxu0 0.0
    %941 = vmatpush1.msra.mxu0 %v895
    %942 = vmatprep.subr.mxu0 0.0
    %943 = vmatpush1.msra.mxu0 %v894
    %944 = vmatprep.subr.mxu0 0.0
    %945 = vmatpush1.msra.mxu0 %v893
    %946 = vmatprep.subr.mxu0 0.0
    %947 = vmatpush1.msra.mxu0 %v892
    %948 = vmatprep.subr.mxu0 0.0
    %949 = vmatpush2.msra.mxu0 0.0
    %950 = vmatprep.subr.mxu0 0.0
    %951 = vmatpush2.msra.mxu0 0.0
    %952 = vmatprep.subr.mxu0 0.0
    %953 = vmatpush2.msra.mxu0 0.0
    %954 = vmatprep.subr.mxu0 0.0
    %955 = vmatpush2.msra.mxu0 0.0
    %956 = vmatprep.subr.mxu0 0.0
    %957 = vmatpush2.msra.mxu0 0.0
    %958 = vmatprep.subr.mxu0 0.0
    %959 = vmatpush2.msra.mxu0 0.0
    %960 = vmatprep.subr.mxu0 0.0
    %961 = vmatpush2.msra.mxu0 0.0
    %962 = vmatprep.subr.mxu0 0.0
    %963 = vmatpush2.msra.mxu0 0.0
    %964 = vmatprep.subr.mxu0 0.0
    %965 = vmatpush2.msra.mxu0 0.0
    %966 = vmatprep.subr.mxu0 0.0
    %967 = vmatpush2.msra.mxu0 0.0
    %968 = vmatprep.subr.mxu0 0.0
    %969 = vmatpush2.msra.mxu0 0.0
    %970 = vmatprep.subr.mxu0 0.0
    %971 = vmatpush2.msra.mxu0 0.0
    %972 = vmatprep.subr.mxu0 0.0
    %973 = vmatpush2.msra.mxu0 0.0
    %974 = vmatprep.subr.mxu0 0.0
    %975 = vmatpush2.msra.mxu0 0.0
    %976 = vmatprep.subr.mxu0 0.0
    %977 = vmatpush2.msra.mxu0 0.0
    %978 = vmatprep.subr.mxu0 0.0
    %979 = vmatpush2.msra.mxu0 0.0
    %980 = vmatprep.mubr.f32.mxu0 0.0
    %981 = vmatmul.mubr.f32.gmra.mxu0 %v890
    %v982 = vpop.f32.mrf.mxu0
    %v983 = vadd.f32 %v914, %v982
    %v984 = vpop.f32.mrf.mxu0
    %985 = vdwg.mxu0
    %v986 = vmax.f32 %v983, 0.0
    %s987 = scalar_lea.vmem [#allocation2], 1280
    %v988 = vld [vmem:[%s987] sm:$0xff]
    %v989 = vld [vmem:[%s987 + $0x8] sm:$0xff]
    %v990 = vld [vmem:[%s987 + $0x10] sm:$0xff]
    %v991 = vld [vmem:[%s987 + $0x18] sm:$0xff]
    %v992 = vld [vmem:[%s987 + $0x20] sm:$0xff]
    %v993 = vld [vmem:[%s987 + $0x28] sm:$0xff]
    %v994 = vld [vmem:[%s987 + $0x30] sm:$0xff]
    %v995 = vld [vmem:[%s987 + $0x38] sm:$0xff]
    %v996 = vld [vmem:[%s987 + $0x40] sm:$0xff]
    %v997 = vld [vmem:[%s987 + $0x48] sm:$0xff]
    %v998 = vld [vmem:[%s987 + $0x50] sm:$0xff]
    %v999 = vld [vmem:[%s987 + $0x58] sm:$0xff]
    %v1000 = vld [vmem:[%s987 + $0x60] sm:$0xff]
    %v1001 = vld [vmem:[%s987 + $0x68] sm:$0xff]
    %v1002 = vld [vmem:[%s987 + $0x70] sm:$0xff]
    %v1003 = vld [vmem:[%s987 + $0x78] sm:$0xff]
    %s1004 = scalar_lea.vmem %s2, 10
    %v1005 = vld [vmem:[%s1004] sm:$0x1]
    %v1007 = vlaneseq
    %v1008 = vshrl.u32 %v1007, 7
    %v1009 = vsub.s32 0, %v1008
    %v1010 = vrot.slane %v1005, %v1009
    %1012 = vmatprep.subr.mxu0 0.0
    %1013 = vmatpush1.msra.mxu0 %v1003
    %1014 = vmatprep.subr.mxu0 0.0
    %1015 = vmatpush1.msra.mxu0 %v1002
    %1016 = vmatprep.subr.mxu0 0.0
    %1017 = vmatpush1.msra.mxu0 %v1001
    %1018 = vmatprep.subr.mxu0 0.0
    %1019 = vmatpush1.msra.mxu0 %v1000
    %1020 = vmatprep.subr.mxu0 0.0
    %1021 = vmatpush1.msra.mxu0 %v999
    %1022 = vmatprep.subr.mxu0 0.0
    %1023 = vmatpush1.msra.mxu0 %v998
    %1024 = vmatprep.subr.mxu0 0.0
    %1025 = vmatpush1.msra.mxu0 %v997
    %1026 = vmatprep.subr.mxu0 0.0
    %1027 = vmatpush1.msra.mxu0 %v996
    %1028 = vmatprep.subr.mxu0 0.0
    %1029 = vmatpush1.msra.mxu0 %v995
    %1030 = vmatprep.subr.mxu0 0.0
    %1031 = vmatpush1.msra.mxu0 %v994
    %1032 = vmatprep.subr.mxu0 0.0
    %1033 = vmatpush1.msra.mxu0 %v993
    %1034 = vmatprep.subr.mxu0 0.0
    %1035 = vmatpush1.msra.mxu0 %v992
    %1036 = vmatprep.subr.mxu0 0.0
    %1037 = vmatpush1.msra.mxu0 %v991
    %1038 = vmatprep.subr.mxu0 0.0
    %1039 = vmatpush1.msra.mxu0 %v990
    %1040 = vmatprep.subr.mxu0 0.0
    %1041 = vmatpush1.msra.mxu0 %v989
    %1042 = vmatprep.subr.mxu0 0.0
    %1043 = vmatpush1.msra.mxu0 %v988
    %1044 = vmatprep.subr.mxu0 0.0
    %1045 = vmatpush2.msra.mxu0 0.0
    %1046 = vmatprep.subr.mxu0 0.0
    %1047 = vmatpush2.msra.mxu0 0.0
    %1048 = vmatprep.subr.mxu0 0.0
    %1049 = vmatpush2.msra.mxu0 0.0
    %1050 = vmatprep.subr.mxu0 0.0
    %1051 = vmatpush2.msra.mxu0 0.0
    %1052 = vmatprep.subr.mxu0 0.0
    %1053 = vmatpush2.msra.mxu0 0.0
    %1054 = vmatprep.subr.mxu0 0.0
    %1055 = vmatpush2.msra.mxu0 0.0
    %1056 = vmatprep.subr.mxu0 0.0
    %1057 = vmatpush2.msra.mxu0 0.0
    %1058 = vmatprep.subr.mxu0 0.0
    %1059 = vmatpush2.msra.mxu0 0.0
    %1060 = vmatprep.subr.mxu0 0.0
    %1061 = vmatpush2.msra.mxu0 0.0
    %1062 = vmatprep.subr.mxu0 0.0
    %1063 = vmatpush2.msra.mxu0 0.0
    %1064 = vmatprep.subr.mxu0 0.0
    %1065 = vmatpush2.msra.mxu0 0.0
    %1066 = vmatprep.subr.mxu0 0.0
    %1067 = vmatpush2.msra.mxu0 0.0
    %1068 = vmatprep.subr.mxu0 0.0
    %1069 = vmatpush2.msra.mxu0 0.0
    %1070 = vmatprep.subr.mxu0 0.0
    %1071 = vmatpush2.msra.mxu0 0.0
    %1072 = vmatprep.subr.mxu0 0.0
    %1073 = vmatpush2.msra.mxu0 0.0
    %1074 = vmatprep.subr.mxu0 0.0
    %1075 = vmatpush2.msra.mxu0 0.0
    %1076 = vmatprep.mubr.f32.mxu0 0.0
    %1077 = vmatmul.mubr.f32.gmra.mxu0 %v986
    %v1078 = vpop.f32.mrf.mxu0
    %v1079 = vadd.f32 %v1010, %v1078
    %v1080 = vpop.f32.mrf.mxu0
    %1081 = vdwg.mxu0
    %v1082 = vxor.u32 %v1079, 2147483648
    %v1083 = vmul.f32 %v1082, 1.442695
    %v1084 = vpow.pop %v1083
    %v1085 = vadd.f32 %v1084, 1.0
    %v1086 = vrcp.pop %v1085
    %v1087 = vmul.f32 1.0, %v1086
    %vm1088 = vcmask 7168
    %1089 = vst.msk [vmem:[%s3] sm:$0xff] %vm1088, %v1087
    // Predicated region
    $region18: #{ffnet10hidden_forward.1} parent=1 // pred_check
      _
    $region19: #{ffnet10hidden_forward.1} parent=1 // pred_check_branch
      %1091 = sbr.rel (0) target = $region21
    $region20: #{ffnet10hidden_forward.1} parent=1 // pred_region
      _
    $region21: #{ffnet10hidden_forward.1} parent=1 // pred_fallthru
      _
    // Predicated region
    $region22: #{ffnet10hidden_forward.1} parent=1 // pred_check
      _
    $region23: #{ffnet10hidden_forward.1} parent=1 // pred_check_branch
      %1093 = sbr.rel (0) target = $region25
    $region24: #{ffnet10hidden_forward.1} parent=1 // pred_region
      _
    $region25: #{ffnet10hidden_forward.1} parent=1 // pred_fallthru
      _
    %1094 = vsyncpa [#allocation3], 1

</llo_original>
